<compile_context>
chip_gen: v7x
topology: tpu7x:2x2x1
jax: 0.10.0
libtpu: 0.0.40
codegen_flags: <defaults>
</compile_context>

<pallas_src>
import math
import functools

import numpy as np
import jax
import jax.numpy as jnp
from jax import lax
from jax.experimental import pallas as pl
from jax.experimental.pallas import tpu as pltpu


def fff_kernel(x_ref, w1_ref, w2_ref, lo_ref, hi_ref, y_ref, *, depth):
    x = x_ref[...]                     # (TB, nIn)        f32
    w1 = w1_ref[...]                   # (Np, nIn)        f32   Np = 2**depth
    w2 = w2_ref[...]                   # (Np, nOutP)      f32 or bf16
    lo = lo_ref[...]                   # (1,  Np)         int32
    hi = hi_ref[...]                   # (1,  Np)         int32
    tb = x.shape[0]

    # All node logits at once; contract dim 1 of both operands -> no explicit
    # transpose of w1 (nIn already on lanes for both).
    logits = lax.dot_general(
        x, w1, (((1,), (1,)), ((), ())), preferred_element_type=jnp.float32
    )                                  # (TB, Np)

    # Routing loop (sequential in depth).  Padded indexing: root = 1,
    # children of j are 2j / 2j+1; level d lives in columns [2^d, 2^(d+1)).
    cur = jnp.ones((tb, 1), jnp.int32)
    for d in range(depth):
        base = 1 << d
        width = 1 << d
        window = logits[:, base:base + width]                     # (TB, 2^d)
        local = lax.broadcasted_iota(jnp.int32, (tb, width), 1)
        onehot = (local == (cur - base)).astype(jnp.float32)
        lam = jnp.sum(window * onehot, axis=-1, keepdims=True)    # (TB, 1)
        plane = (lam > 0.0).astype(jnp.int32)
        cur = cur * 2 + plane

    # cur is now the (virtual) leaf in [2^depth, 2^(depth+1)).  Node j was
    # visited iff lo[j] <= leaf < hi[j]; its contribution coefficient equals
    # its logit.  Single MXU matmul for the whole output.
    on_path = jnp.logical_and(cur >= lo, cur < hi)                # (TB, Np)
    c = jnp.where(on_path, logits, 0.0)
    y = jnp.dot(c.astype(w2.dtype), w2, preferred_element_type=jnp.float32)
    y_ref[...] = y.astype(y_ref.dtype)


def fff_forward(x, w1s, w2s, depth, *, block_b=256, mxu_dtype=jnp.float32):
    B, n_in = x.shape
    n_nodes, n_out = w2s.shape
    assert n_nodes == 2 ** depth - 1

    n_nodes_p = 2 ** depth
    # Dummy zero node at padded index 0 -> power-of-two node count and
    # aligned per-level column windows.
    w1p = jnp.concatenate([jnp.zeros((1, n_in), w1s.dtype), w1s], axis=0)
    w2p = jnp.concatenate([jnp.zeros((1, n_out), w2s.dtype), w2s], axis=0)

    # Lane-dense output: pad nOut to a multiple of 128 (sliced off on host).
    n_out_p = max(128, ((n_out + 127) // 128) * 128)
    if n_out_p != n_out:
        w2p = jnp.pad(w2p, ((0, 0), (0, n_out_p - n_out)))
    w2p = w2p.astype(mxu_dtype)   # bf16 here is optional (v6e/v7x); routing stays f32

    # Per-column ancestor ranges: padded node j is on the path of leaf L iff
    # lo[j] <= L < hi[j], with L in [2^depth, 2^(depth+1)).
    lo_np = np.zeros((n_nodes_p,), np.int32)
    hi_np = np.zeros((n_nodes_p,), np.int32)
    for j in range(1, n_nodes_p):
        level = j.bit_length() - 1
        shift = depth - level
        lo_np[j] = j << shift
        hi_np[j] = (j + 1) << shift
    lo = jnp.asarray(lo_np).reshape(1, n_nodes_p)
    hi = jnp.asarray(hi_np).reshape(1, n_nodes_p)

    tb = block_b if B >= block_b else B
    grid = (pl.cdiv(B, tb),)

    # VMEM budget: resident (double-buffered) weights + pipelined x/y tiles +
    # in-kernel logits; generous headroom, clamped to v7x's 64 MiB physical.
    itemsize = 4
    vmem_bytes = itemsize * (
        2 * (n_nodes_p * n_in + n_nodes_p * n_out_p + 2 * n_nodes_p)  # weights/lo/hi
        + 2 * (tb * n_in + tb * n_out_p)                              # x/y double-buffer
        + 2 * tb * n_nodes_p                                          # logits + slack
    )
    vmem_limit = int(min(max(2 * vmem_bytes, 16 * 1024 * 1024), 64 * 1024 * 1024))

    kernel = functools.partial(fff_kernel, depth=depth)
    y_p = pl.pallas_call(
        kernel,
        out_shape=jax.ShapeDtypeStruct((B, n_out_p), jnp.float32),
        grid_spec=pltpu.PrefetchScalarGridSpec(
            num_scalar_prefetch=0,
            grid=grid,
            in_specs=[
                pl.BlockSpec((tb, n_in), lambda i: (i, 0)),            # x tile
                pl.BlockSpec((n_nodes_p, n_in), lambda i: (0, 0)),     # w1 (resident)
                pl.BlockSpec((n_nodes_p, n_out_p), lambda i: (0, 0)),  # w2 (resident)
                pl.BlockSpec((1, n_nodes_p), lambda i: (0, 0)),        # lo
                pl.BlockSpec((1, n_nodes_p), lambda i: (0, 0)),        # hi
            ],
            out_specs=pl.BlockSpec((tb, n_out_p), lambda i: (i, 0)),
        ),
        compiler_params=pltpu.CompilerParams(
            dimension_semantics=("parallel",),
            vmem_limit_bytes=vmem_limit),
    )(x, w1p, w2p, lo, hi)
    return y_p[:, :n_out]


def fff_reference(x, w1s, w2s, depth):
    # Pure-JAX reference mirroring the PyTorch forward exactly.
    B = x.shape[0]
    n_out = w2s.shape[1]
    cur = jnp.zeros((B,), jnp.int32)
    y = jnp.zeros((B, n_out), jnp.float32)
    for _ in range(depth):
        w1_sel = w1s[cur]                                   # (B, nIn)
        lam = jnp.einsum('bi,bi->b', x, w1_sel)
        y = y + lam[:, None] * w2s[cur]
        plane = (lam > 0).astype(jnp.int32)
        cur = cur * 2 + 1 + plane
    return y


if __name__ == "__main__":
    # Small shapes consistent with the module: nIn=32 -> depth=5, n_nodes=31.
    B, n_in, n_out = 8, 32, 16
    depth = int(math.floor(math.log2(n_in)))
    n_nodes = 2 ** depth - 1

    key = jax.random.PRNGKey(0)
    kx, k1, k2 = jax.random.split(key, 3)

    # hyperspherical-shell init: random unit vectors per node.
    w1s = jax.random.normal(k1, (n_nodes, n_in), jnp.float32)
    w1s = w1s / jnp.linalg.norm(w1s, axis=-1, keepdims=True)
    w2s = jax.random.normal(k2, (n_nodes, n_out), jnp.float32)
    w2s = w2s / jnp.linalg.norm(w2s, axis=-1, keepdims=True)

    x = jax.random.normal(kx, (B, n_in), jnp.float32)

    y = fff_forward(x, w1s, w2s, depth)
    y = jax.block_until_ready(y)

    y_ref = fff_reference(x, w1s, w2s, depth)
    assert y.shape == (B, n_out)
    assert jnp.allclose(y, y_ref, atol=1e-5, rtol=1e-5), "mismatch vs reference"

    print("KERNEL_OK")
</pallas_src>

<mosaic_0001>
module attributes {stable_mosaic.version = 11 : i64} {
  func.func @fff_kernel(%arg0: i32, %arg1: memref<8x32xf32, #tpu.memory_space<vmem>>, %arg2: memref<32x32xf32, #tpu.memory_space<vmem>>, %arg3: memref<32x128xf32, #tpu.memory_space<vmem>>, %arg4: memref<1x32xi32, #tpu.memory_space<vmem>>, %arg5: memref<1x32xi32, #tpu.memory_space<vmem>>, %arg6: memref<8x128xf32, #tpu.memory_space<vmem>>) attributes {dimension_semantics = [#tpu.dimension_semantics<parallel>], iteration_bounds = array<i64: 1>, scalar_prefetch = 0 : i64, scratch_operands = 0 : i64, tpu.core_type = #tpu.core_type<tc>, window_params = [{transform_indices = @transform_0, window_bounds = array<i64: 8, 32>}, {pipeline_mode = #tpu.pipeline_mode<synchronous>, transform_indices = @transform_1, window_bounds = array<i64: 32, 32>}, {pipeline_mode = #tpu.pipeline_mode<synchronous>, transform_indices = @transform_2, window_bounds = array<i64: 32, 128>}, {pipeline_mode = #tpu.pipeline_mode<synchronous>, transform_indices = @transform_3, window_bounds = array<i64: 1, 32>}, {pipeline_mode = #tpu.pipeline_mode<synchronous>, transform_indices = @transform_4, window_bounds = array<i64: 1, 32>}, {transform_indices = @transform_5, window_bounds = array<i64: 8, 128>}]} {
    %c0 = arith.constant 0 : index
    %c0_0 = arith.constant 0 : index
    %0 = vector.load %arg1[%c0, %c0_0] : memref<8x32xf32, #tpu.memory_space<vmem>>, vector<8x32xf32>
    %c0_1 = arith.constant 0 : index
    %c0_2 = arith.constant 0 : index
    %1 = vector.load %arg2[%c0_1, %c0_2] : memref<32x32xf32, #tpu.memory_space<vmem>>, vector<32x32xf32>
    %c0_3 = arith.constant 0 : index
    %c0_4 = arith.constant 0 : index
    %2 = vector.load %arg3[%c0_3, %c0_4] : memref<32x128xf32, #tpu.memory_space<vmem>>, vector<32x128xf32>
    %c0_5 = arith.constant 0 : index
    %c0_6 = arith.constant 0 : index
    %3 = vector.load %arg4[%c0_5, %c0_6] : memref<1x32xi32, #tpu.memory_space<vmem>>, vector<1x32xi32>
    %c0_7 = arith.constant 0 : index
    %c0_8 = arith.constant 0 : index
    %4 = vector.load %arg5[%c0_7, %c0_8] : memref<1x32xi32, #tpu.memory_space<vmem>>, vector<1x32xi32>
    %cst = arith.constant dense<0.000000e+00> : vector<8x32xf32>
    %5 = tpu.matmul %0, %1, %cst {dimension_numbers = #tpu.dot_dimension_numbers<[1], [1], [0], [0], [0, 0, 1, 0], [], []>} : vector<8x32xf32>, vector<32x32xf32>, vector<8x32xf32> -> vector<8x32xf32>
    %c1_i32 = arith.constant 1 : i32
    %6 = vector.broadcast %c1_i32 : i32 to vector<8x1xi32>
    %7 = vector.extract_strided_slice %5 {offsets = [0, 1], sizes = [8, 1], strides = [1, 1]} : vector<8x32xf32> to vector<8x1xf32>
    %8 = tpu.iota {dimensions = array<i32: 1>} : vector<8x1xi32>
    %c1_i32_9 = arith.constant 1 : i32
    %9 = vector.broadcast %c1_i32_9 : i32 to vector<8x1xi32>
    %10 = arith.subi %6, %9 : vector<8x1xi32>
    %11 = arith.cmpi eq, %8, %10 : vector<8x1xi32>
    %12 = arith.extui %11 : vector<8x1xi1> to vector<8x1xi32>
    %13 = arith.sitofp %12 : vector<8x1xi32> to vector<8x1xf32>
    %14 = arith.mulf %7, %13 : vector<8x1xf32>
    %cst_10 = arith.constant dense<0.000000e+00> : vector<8xf32>
    %15 = vector.multi_reduction <add>, %14, %cst_10 [1] : vector<8x1xf32> to vector<8xf32>
    %16 = vector.shape_cast %15 : vector<8xf32> to vector<8x1xf32>
    %cst_11 = arith.constant 0.000000e+00 : f32
    %17 = vector.broadcast %cst_11 : f32 to vector<8x1xf32>
    %18 = arith.cmpf ogt, %16, %17 : vector<8x1xf32>
    %19 = arith.extui %18 : vector<8x1xi1> to vector<8x1xi32>
    %c2_i32 = arith.constant 2 : i32
    %20 = vector.broadcast %c2_i32 : i32 to vector<8x1xi32>
    %21 = arith.muli %6, %20 : vector<8x1xi32>
    %22 = arith.addi %21, %19 : vector<8x1xi32>
    %23 = vector.extract_strided_slice %5 {offsets = [0, 2], sizes = [8, 2], strides = [1, 1]} : vector<8x32xf32> to vector<8x2xf32>
    %24 = tpu.iota {dimensions = array<i32: 1>} : vector<8x2xi32>
    %c2_i32_12 = arith.constant 2 : i32
    %25 = vector.broadcast %c2_i32_12 : i32 to vector<8x1xi32>
    %26 = arith.subi %22, %25 : vector<8x1xi32>
    %27 = vector.broadcast %26 : vector<8x1xi32> to vector<8x2xi32>
    %28 = arith.cmpi eq, %24, %27 : vector<8x2xi32>
    %29 = arith.extui %28 : vector<8x2xi1> to vector<8x2xi32>
    %30 = arith.sitofp %29 : vector<8x2xi32> to vector<8x2xf32>
    %31 = arith.mulf %23, %30 : vector<8x2xf32>
    %cst_13 = arith.constant dense<0.000000e+00> : vector<8xf32>
    %32 = vector.multi_reduction <add>, %31, %cst_13 [1] : vector<8x2xf32> to vector<8xf32>
    %33 = vector.shape_cast %32 : vector<8xf32> to vector<8x1xf32>
    %cst_14 = arith.constant 0.000000e+00 : f32
    %34 = vector.broadcast %cst_14 : f32 to vector<8x1xf32>
    %35 = arith.cmpf ogt, %33, %34 : vector<8x1xf32>
    %36 = arith.extui %35 : vector<8x1xi1> to vector<8x1xi32>
    %c2_i32_15 = arith.constant 2 : i32
    %37 = vector.broadcast %c2_i32_15 : i32 to vector<8x1xi32>
    %38 = arith.muli %22, %37 : vector<8x1xi32>
    %39 = arith.addi %38, %36 : vector<8x1xi32>
    %40 = vector.extract_strided_slice %5 {offsets = [0, 4], sizes = [8, 4], strides = [1, 1]} : vector<8x32xf32> to vector<8x4xf32>
    %41 = tpu.iota {dimensions = array<i32: 1>} : vector<8x4xi32>
    %c4_i32 = arith.constant 4 : i32
    %42 = vector.broadcast %c4_i32 : i32 to vector<8x1xi32>
    %43 = arith.subi %39, %42 : vector<8x1xi32>
    %44 = vector.broadcast %43 : vector<8x1xi32> to vector<8x4xi32>
    %45 = arith.cmpi eq, %41, %44 : vector<8x4xi32>
    %46 = arith.extui %45 : vector<8x4xi1> to vector<8x4xi32>
    %47 = arith.sitofp %46 : vector<8x4xi32> to vector<8x4xf32>
    %48 = arith.mulf %40, %47 : vector<8x4xf32>
    %cst_16 = arith.constant dense<0.000000e+00> : vector<8xf32>
    %49 = vector.multi_reduction <add>, %48, %cst_16 [1] : vector<8x4xf32> to vector<8xf32>
    %50 = vector.shape_cast %49 : vector<8xf32> to vector<8x1xf32>
    %cst_17 = arith.constant 0.000000e+00 : f32
    %51 = vector.broadcast %cst_17 : f32 to vector<8x1xf32>
    %52 = arith.cmpf ogt, %50, %51 : vector<8x1xf32>
    %53 = arith.extui %52 : vector<8x1xi1> to vector<8x1xi32>
    %c2_i32_18 = arith.constant 2 : i32
    %54 = vector.broadcast %c2_i32_18 : i32 to vector<8x1xi32>
    %55 = arith.muli %39, %54 : vector<8x1xi32>
    %56 = arith.addi %55, %53 : vector<8x1xi32>
    %57 = vector.extract_strided_slice %5 {offsets = [0, 8], sizes = [8, 8], strides = [1, 1]} : vector<8x32xf32> to vector<8x8xf32>
    %58 = tpu.iota {dimensions = array<i32: 1>} : vector<8x8xi32>
    %c8_i32 = arith.constant 8 : i32
    %59 = vector.broadcast %c8_i32 : i32 to vector<8x1xi32>
    %60 = arith.subi %56, %59 : vector<8x1xi32>
    %61 = vector.broadcast %60 : vector<8x1xi32> to vector<8x8xi32>
    %62 = arith.cmpi eq, %58, %61 : vector<8x8xi32>
    %63 = arith.extui %62 : vector<8x8xi1> to vector<8x8xi32>
    %64 = arith.sitofp %63 : vector<8x8xi32> to vector<8x8xf32>
    %65 = arith.mulf %57, %64 : vector<8x8xf32>
    %cst_19 = arith.constant dense<0.000000e+00> : vector<8xf32>
    %66 = vector.multi_reduction <add>, %65, %cst_19 [1] : vector<8x8xf32> to vector<8xf32>
    %67 = vector.shape_cast %66 : vector<8xf32> to vector<8x1xf32>
    %cst_20 = arith.constant 0.000000e+00 : f32
    %68 = vector.broadcast %cst_20 : f32 to vector<8x1xf32>
    %69 = arith.cmpf ogt, %67, %68 : vector<8x1xf32>
    %70 = arith.extui %69 : vector<8x1xi1> to vector<8x1xi32>
    %c2_i32_21 = arith.constant 2 : i32
    %71 = vector.broadcast %c2_i32_21 : i32 to vector<8x1xi32>
    %72 = arith.muli %56, %71 : vector<8x1xi32>
    %73 = arith.addi %72, %70 : vector<8x1xi32>
    %74 = vector.extract_strided_slice %5 {offsets = [0, 16], sizes = [8, 16], strides = [1, 1]} : vector<8x32xf32> to vector<8x16xf32>
    %75 = tpu.iota {dimensions = array<i32: 1>} : vector<8x16xi32>
    %c16_i32 = arith.constant 16 : i32
    %76 = vector.broadcast %c16_i32 : i32 to vector<8x1xi32>
    %77 = arith.subi %73, %76 : vector<8x1xi32>
    %78 = vector.broadcast %77 : vector<8x1xi32> to vector<8x16xi32>
    %79 = arith.cmpi eq, %75, %78 : vector<8x16xi32>
    %80 = arith.extui %79 : vector<8x16xi1> to vector<8x16xi32>
    %81 = arith.sitofp %80 : vector<8x16xi32> to vector<8x16xf32>
    %82 = arith.mulf %74, %81 : vector<8x16xf32>
    %cst_22 = arith.constant dense<0.000000e+00> : vector<8xf32>
    %83 = vector.multi_reduction <add>, %82, %cst_22 [1] : vector<8x16xf32> to vector<8xf32>
    %84 = vector.shape_cast %83 : vector<8xf32> to vector<8x1xf32>
    %cst_23 = arith.constant 0.000000e+00 : f32
    %85 = vector.broadcast %cst_23 : f32 to vector<8x1xf32>
    %86 = arith.cmpf ogt, %84, %85 : vector<8x1xf32>
    %87 = arith.extui %86 : vector<8x1xi1> to vector<8x1xi32>
    %c2_i32_24 = arith.constant 2 : i32
    %88 = vector.broadcast %c2_i32_24 : i32 to vector<8x1xi32>
    %89 = arith.muli %73, %88 : vector<8x1xi32>
    %90 = arith.addi %89, %87 : vector<8x1xi32>
    %91 = vector.broadcast %90 : vector<8x1xi32> to vector<8x32xi32>
    %92 = vector.broadcast %3 : vector<1x32xi32> to vector<8x32xi32>
    %93 = arith.cmpi sge, %91, %92 : vector<8x32xi32>
    %94 = vector.broadcast %90 : vector<8x1xi32> to vector<8x32xi32>
    %95 = vector.broadcast %4 : vector<1x32xi32> to vector<8x32xi32>
    %96 = arith.cmpi slt, %94, %95 : vector<8x32xi32>
    %97 = arith.andi %93, %96 : vector<8x32xi1>
    %cst_25 = arith.constant 0.000000e+00 : f32
    %98 = vector.broadcast %cst_25 : f32 to vector<8x32xf32>
    %99 = arith.select %97, %5, %98 : vector<8x32xi1>, vector<8x32xf32>
    %cst_26 = arith.constant dense<0.000000e+00> : vector<8x128xf32>
    %100 = tpu.matmul %99, %2, %cst_26 {dimension_numbers = #tpu.dot_dimension_numbers<[1], [0], [0], [1], [0, 0, 1, 1], [], []>} : vector<8x32xf32>, vector<32x128xf32>, vector<8x128xf32> -> vector<8x128xf32>
    %c0_27 = arith.constant 0 : index
    %c0_28 = arith.constant 0 : index
    %101 = vector.load %arg6[%c0_27, %c0_28] : memref<8x128xf32, #tpu.memory_space<vmem>>, vector<8x128xf32>
    tpu.vector_store %arg6[%c0_27, %c0_28], %100 {strides = array<i32>} : memref<8x128xf32, #tpu.memory_space<vmem>>, vector<8x128xf32>,
    return
  }
  func.func @transform_0(%arg0: i32) -> (i32, i32) {
    %c0_i32 = arith.constant 0 : i32
    %c0_i32_0 = arith.constant 0 : i32
    return %arg0, %c0_i32 : i32, i32
  }
  func.func @transform_1(%arg0: i32) -> (i32, i32) {
    %c0_i32 = arith.constant 0 : i32
    %c0_i32_0 = arith.constant 0 : i32
    %c0_i32_1 = arith.constant 0 : i32
    return %c0_i32, %c0_i32_0 : i32, i32
  }
  func.func @transform_2(%arg0: i32) -> (i32, i32) {
    %c0_i32 = arith.constant 0 : i32
    %c0_i32_0 = arith.constant 0 : i32
    %c0_i32_1 = arith.constant 0 : i32
    return %c0_i32, %c0_i32_0 : i32, i32
  }
  func.func @transform_3(%arg0: i32) -> (i32, i32) {
    %c0_i32 = arith.constant 0 : i32
    %c0_i32_0 = arith.constant 0 : i32
    %c0_i32_1 = arith.constant 0 : i32
    return %c0_i32, %c0_i32_0 : i32, i32
  }
  func.func @transform_4(%arg0: i32) -> (i32, i32) {
    %c0_i32 = arith.constant 0 : i32
    %c0_i32_0 = arith.constant 0 : i32
    %c0_i32_1 = arith.constant 0 : i32
    return %c0_i32, %c0_i32_0 : i32, i32
  }
  func.func @transform_5(%arg0: i32) -> (i32, i32) {
    %c0_i32 = arith.constant 0 : i32
    %c0_i32_0 = arith.constant 0 : i32
    return %arg0, %c0_i32 : i32, i32
  }
}

</mosaic_0001>

<llo_original>
// kernel: tpu_custom_call.1
$region0: #{tpu_custom_call.1}
  #allocation0 [shape = 'u32[]', space=smem, size = 0x4, offset = 0x4, fixed_abs, tag = 'smem constant byte address 0x4 - core index']
  #allocation1 [shape = 'u32[144,128]{1,0:T(1,128)}', space=vmem, size = 0x12000, scoped, tag = 'internal scratch']
  %s0 = inlined_call_operand.hbm [shape: f32[8,32], index: 0, kind: input, shape index: {}]
  %s1 = inlined_call_operand.hbm [shape: f32[32,32], index: 1, kind: input, shape index: {}]
  %s2 = inlined_call_operand.hbm [shape: f32[32,128], index: 2, kind: input, shape index: {}]
  %s3 = inlined_call_operand.vmem [shape: s32[1,32], index: 3, kind: input, shape index: {}]
  %s4 = inlined_call_operand.vmem [shape: s32[1,32], index: 4, kind: input, shape index: {}]
  %s5 = inlined_call_operand.hbm [shape: f32[8,128], index: 5, kind: output, shape index: {}]
  %s6 = sld [smem:[#allocation0]]
  $region42: #{tpu_custom_call.1} parent=0
    _
  %s8 = ssub.s32 1, %s6
  %s9 = scalar_select 0, %s8, %s6
  $region1: #{tpu_custom_call.1} parent=0
    #allocation2 [shape = 'u8[4096]{0}', space=vmem, size = 0x1000, scoped, tag = 'input window, operand 0, single buffered']
    #allocation3 [shape = 's32[1]{0}', space=sflag, size = 0x4, scoped, tag = 'scoped memory for tpu_custom_call.1']
    #allocation4 [shape = 's32[1]{0}', space=sflag, size = 0x4, scoped, tag = 'scoped memory for tpu_custom_call.1']
    #allocation5 [shape = 'u8[16384]{0}', space=vmem, size = 0x4000, scoped, tag = 'input window, operand 1, single buffered']
    #allocation6 [shape = 's32[1]{0}', space=sflag, size = 0x4, scoped, tag = 'scoped memory for tpu_custom_call.1']
    #allocation7 [shape = 'u8[16384]{0}', space=vmem, size = 0x4000, scoped, tag = 'input window, operand 2, single buffered']
    #allocation8 [shape = 'u8[4096]{0}', space=vmem, size = 0x1000, scoped, tag = 'output window, operand 0, single buffered']
    %10 = vsyncpa [#allocation3], 0
    %11 = vsyncpa [#allocation6], 0
    %12 = vsyncpa [#allocation4], 0
    // Predicated region
    $region2: #{tpu_custom_call.1} parent=1 // pred_check
      _
    $region3: #{tpu_custom_call.1} parent=1 // pred_check_branch
      %14 = sbr.rel (0) target = $region5
    $region4: #{tpu_custom_call.1} parent=1 // pred_region
      %s16 = ssub.s32 128, 128
      %17 = vsyncadd [#allocation3], %s16
      %s19 = sshll.u32 [#allocation2], 4
      %s20 = int_to_ptr.vmem [resolvable:$true] %s19
      %22 = dma.hbm_to_vmem [thread:$0]  %s0, 128, %s20, [#allocation3]
    $region5: #{tpu_custom_call.1} parent=1 // pred_fallthru
      _
    // Predicated region
    $region6: #{tpu_custom_call.1} parent=1 // pred_check
      _
    $region7: #{tpu_custom_call.1} parent=1 // pred_check_branch
      %24 = sbr.rel (0) target = $region9
    $region8: #{tpu_custom_call.1} parent=1 // pred_region
      %s26 = ssub.s32 512, 512
      %27 = vsyncadd [#allocation6], %s26
      %s28 = sshll.u32 [#allocation5], 4
      %s29 = int_to_ptr.vmem [resolvable:$true] %s28
      %34 = dma.hbm_to_vmem [thread:$0]  %s1, 512, %s29, [#allocation6], 128, 128, 8
    $region9: #{tpu_custom_call.1} parent=1 // pred_fallthru
      _
    // Predicated region
    $region10: #{tpu_custom_call.1} parent=1 // pred_check
      _
    $region11: #{tpu_custom_call.1} parent=1 // pred_check_branch
      %36 = sbr.rel (0) target = $region13
    $region12: #{tpu_custom_call.1} parent=1 // pred_region
      %s38 = ssub.s32 512, 512
      %39 = vsyncadd [#allocation6], %s38
      %s40 = sshll.u32 [#allocation7], 4
      %s41 = int_to_ptr.vmem [resolvable:$true] %s40
      %46 = dma.hbm_to_vmem [thread:$0]  %s2, 512, %s41, [#allocation6], 128, 128, 8
    $region13: #{tpu_custom_call.1} parent=1 // pred_fallthru
      _
    // Predicated region
    $region14: #{tpu_custom_call.1} parent=1 // pred_check
      _
    $region15: #{tpu_custom_call.1} parent=1 // pred_check_branch
      %48 = sbr.rel (0) target = $region17
    $region16: #{tpu_custom_call.1} parent=1 // pred_region
      _
    $region17: #{tpu_custom_call.1} parent=1 // pred_fallthru
      _
    // Predicated region
    $region18: #{tpu_custom_call.1} parent=1 // pred_check
      _
    $region19: #{tpu_custom_call.1} parent=1 // pred_check_branch
      %50 = sbr.rel (0) target = $region21
    $region20: #{tpu_custom_call.1} parent=1 // pred_region
      _
    $region21: #{tpu_custom_call.1} parent=1 // pred_fallthru
      _
    // Predicated region
    $region22: #{tpu_custom_call.1} parent=1 // pred_check
      _
    $region23: #{tpu_custom_call.1} parent=1 // pred_check_branch
      %52 = sbr.rel (0) target = $region25
    $region24: #{tpu_custom_call.1} parent=1 // pred_region
      %53 = dma.done [#allocation3], 128
    $region25: #{tpu_custom_call.1} parent=1 // pred_fallthru
      _
    // Predicated region
    $region26: #{tpu_custom_call.1} parent=1 // pred_check
      _
    $region27: #{tpu_custom_call.1} parent=1 // pred_check_branch
      %55 = sbr.rel (0) target = $region29
    $region28: #{tpu_custom_call.1} parent=1 // pred_region
      %56 = dma.done [#allocation6], 512
    $region29: #{tpu_custom_call.1} parent=1 // pred_fallthru
      _
    // Predicated region
    $region30: #{tpu_custom_call.1} parent=1 // pred_check
      _
    $region31: #{tpu_custom_call.1} parent=1 // pred_check_branch
      %58 = sbr.rel (0) target = $region33
    $region32: #{tpu_custom_call.1} parent=1 // pred_region
      %59 = dma.done [#allocation6], 512
    $region33: #{tpu_custom_call.1} parent=1 // pred_fallthru
      _
    %v60 = vld [vmem:[#allocation2] sm:$0xff]
    %v61 = vld [vmem:[#allocation5] sm:$0xff]
    %v62 = vld [vmem:[#allocation5 + $0x8] sm:$0xff]
    %v63 = vld [vmem:[#allocation5 + $0x10] sm:$0xff]
    %v64 = vld [vmem:[#allocation5 + $0x18] sm:$0xff]
    %v65 = vld [vmem:[#allocation7] sm:$0xff]
    %v66 = vld [vmem:[#allocation7 + $0x8] sm:$0xff]
    %v67 = vld [vmem:[#allocation7 + $0x10] sm:$0xff]
    %v68 = vld [vmem:[#allocation7 + $0x18] sm:$0xff]
    %v69 = vld [vmem:[%s3] sm:$0x1]
    %v70 = vld [vmem:[%s4] sm:$0x1]
    %vm71 = vcmask 261120
    %v73 = vsel %vm71, %v60, 0
    %v76 = vsel %vm71, %v61, 0
    %v79 = vsel %vm71, %v62, 0
    %v82 = vsel %vm71, %v63, 0
    %v85 = vsel %vm71, %v64, 0
    %87 = vmatprep.subr.mxu0 0.0
    %88 = vmatpush1.xpose.msra.mxu0 %v76
    %89 = vmatprep.subr.mxu0 0.0
    %90 = vmatpush1.xpose.msra.mxu0 %v79
    %91 = vmatprep.subr.mxu0 0.0
    %92 = vmatpush1.xpose.msra.mxu0 %v82
    %93 = vmatprep.subr.mxu0 0.0
    %94 = vmatpush1.xpose.msra.mxu0 %v85
    %95 = vmatprep.subr.mxu0 0.0
    %96 = vmatpush1.xpose.msra.mxu0 0.0
    %97 = vmatprep.subr.mxu0 0.0
    %98 = vmatpush1.xpose.msra.mxu0 0.0
    %99 = vmatprep.subr.mxu0 0.0
    %100 = vmatpush1.xpose.msra.mxu0 0.0
    %101 = vmatprep.subr.mxu0 0.0
    %102 = vmatpush1.xpose.msra.mxu0 0.0
    %103 = vmatprep.subr.mxu0 0.0
    %104 = vmatpush1.xpose.msra.mxu0 0.0
    %105 = vmatprep.subr.mxu0 0.0
    %106 = vmatpush1.xpose.msra.mxu0 0.0
    %107 = vmatprep.subr.mxu0 0.0
    %108 = vmatpush1.xpose.msra.mxu0 0.0
    %109 = vmatprep.subr.mxu0 0.0
    %110 = vmatpush1.xpose.msra.mxu0 0.0
    %111 = vmatprep.subr.mxu0 0.0
    %112 = vmatpush1.xpose.msra.mxu0 0.0
    %113 = vmatprep.subr.mxu0 0.0
    %114 = vmatpush1.xpose.msra.mxu0 0.0
    %115 = vmatprep.subr.mxu0 0.0
    %116 = vmatpush1.xpose.msra.mxu0 0.0
    %117 = vmatprep.subr.mxu0 0.0
    %118 = vmatpush1.xpose.msra.mxu0 0.0
    %119 = vmatprep.subr.mxu0 0.0
    %120 = vmatpush1.xpose.msra.mxu0 0.0
    %121 = vmatprep.subr.mxu0 0.0
    %122 = vmatpush1.xpose.msra.mxu0 0.0
    %123 = vmatprep.subr.mxu0 0.0
    %124 = vmatpush1.xpose.msra.mxu0 0.0
    %125 = vmatprep.subr.mxu0 0.0
    %126 = vmatpush1.xpose.msra.mxu0 0.0
    %127 = vmatprep.subr.mxu0 0.0
    %128 = vmatpush1.xpose.msra.mxu0 0.0
    %129 = vmatprep.subr.mxu0 0.0
    %130 = vmatpush1.xpose.msra.mxu0 0.0
    %131 = vmatprep.subr.mxu0 0.0
    %132 = vmatpush1.xpose.msra.mxu0 0.0
    %133 = vmatprep.subr.mxu0 0.0
    %134 = vmatpush1.xpose.msra.mxu0 0.0
    %135 = vmatprep.subr.mxu0 0.0
    %136 = vmatpush1.xpose.msra.mxu0 0.0
    %137 = vmatprep.subr.mxu0 0.0
    %138 = vmatpush1.xpose.msra.mxu0 0.0
    %139 = vmatprep.subr.mxu0 0.0
    %140 = vmatpush1.xpose.msra.mxu0 0.0
    %141 = vmatprep.subr.mxu0 0.0
    %142 = vmatpush1.xpose.msra.mxu0 0.0
    %143 = vmatprep.subr.mxu0 0.0
    %144 = vmatpush1.xpose.msra.mxu0 0.0
    %145 = vmatprep.subr.mxu0 0.0
    %146 = vmatpush1.xpose.msra.mxu0 0.0
    %147 = vmatprep.subr.mxu0 0.0
    %148 = vmatpush1.xpose.msra.mxu0 0.0
    %149 = vmatprep.subr.mxu0 0.0
    %150 = vmatpush1.xpose.msra.mxu0 0.0
    %151 = vmatprep.mubr.f32.mxu0 0.0
    %152 = vmatmul.mubr.f32.gmra.mrb[0].mxu0 %v73
    %v153 = vpop.f32.mrb[0].mxu0
    %v154 = vadd.f32 0.0, %v153
    %v155 = vpop.f32.mrb[0].mxu0
    %156 = vdwg.mxu0
    %v157 = vlaneseq
    %v158 = vand.u32 %v157, 127
    %vm159 = vcmp.eq.s32.totalorder %v158, 0
    %v160 = vsel %vm159, 1, 0
    %v161 = vcvt.s32.f32 %v160
    %163 = vrot.lane.b32.xlu0 %v161, 1
    %v164 = vpop.permute.xlu0 %163
    %v166 = vmul.f32 %v154, %v164
    %v167 = vadd.f32 %v166, 0.0
    %vm168 = vcmp.gt.f32.partialorder %v167, 0.0
    %v169 = vsel %vm168, 1, 0
    %v170 = vadd.s32 %v169, 2
    %171 = vset.pattern.permute.xlu0 1
    %172 = vperm.xlu0 %171, %v169
    %v173 = vpop.permute.xlu0 %172
    %vm174 = vcmp.eq.s32.totalorder %v158, %v173
    %v175 = vsel %vm174, 1, 0
    %v176 = vcvt.s32.f32 %v175
    %178 = vrot.lane.b32.xlu0 %v176, 2
    %v179 = vpop.permute.xlu0 %178
    %v181 = vmul.f32 %v154, %v179
    %183 = vrot.lane.b32.xlu0 %v181, 126
    %v184 = vpop.permute.xlu0 %183
    %vm186 = vcmask 15360
    %v187 = vsel %vm186, %v184, 0.0
    %188 = vadd.xlane.f32.xlu0 %v187
    %v189 = vpop.xlane.xlu0 %188
    %vm190 = vcmp.gt.f32.partialorder %v189, 0.0
    %v191 = vsel %vm190, 1, 0
    %v192 = vmul.u32 %v170, 2
    %v193 = vadd.s32 %v192, %v191
    %v194 = vsub.s32 %v193, 4
    %195 = vset.pattern.permute.xlu0 1
    %196 = vperm.xlu0 %195, %v194
    %v197 = vpop.permute.xlu0 %196
    %vm198 = vcmp.eq.s32.totalorder %v158, %v197
    %v199 = vsel %vm198, 1, 0
    %v200 = vcvt.s32.f32 %v199
    %202 = vrot.lane.b32.xlu0 %v200, 4
    %v203 = vpop.permute.xlu0 %202
    %v205 = vmul.f32 %v154, %v203
    %207 = vrot.lane.b32.xlu0 %v205, 124
    %v208 = vpop.permute.xlu0 %207
    %vm210 = vcmask 31744
    %v211 = vsel %vm210, %v208, 0.0
    %212 = vadd.xlane.f32.xlu0 %v211
    %v213 = vpop.xlane.xlu0 %212
    %vm214 = vcmp.gt.f32.partialorder %v213, 0.0
    %v215 = vsel %vm214, 1, 0
    %v216 = vmul.u32 %v193, 2
    %v217 = vadd.s32 %v216, %v215
    %v218 = vsub.s32 %v217, 8
    %219 = vset.pattern.permute.xlu0 1
    %220 = vperm.xlu0 %219, %v218
    %v221 = vpop.permute.xlu0 %220
    %vm222 = vcmp.eq.s32.totalorder %v158, %v221
    %v223 = vsel %vm222, 1, 0
    %v224 = vcvt.s32.f32 %v223
    %226 = vrot.lane.b32.xlu0 %v224, 8
    %v227 = vpop.permute.xlu0 %226
    %v229 = vmul.f32 %v154, %v227
    %231 = vrot.lane.b32.xlu0 %v229, 120
    %v232 = vpop.permute.xlu0 %231
    %vm234 = vcmask 64512
    %v235 = vsel %vm234, %v232, 0.0
    %236 = vadd.xlane.f32.xlu0 %v235
    %v237 = vpop.xlane.xlu0 %236
    %vm238 = vcmp.gt.f32.partialorder %v237, 0.0
    %v239 = vsel %vm238, 1, 0
    %v240 = vmul.u32 %v217, 2
    %v241 = vadd.s32 %v240, %v239
    %v242 = vsub.s32 %v241, 16
    %243 = vset.pattern.permute.xlu0 1
    %244 = vperm.xlu0 %243, %v242
    %v245 = vpop.permute.xlu0 %244
    %vm246 = vcmp.eq.s32.totalorder %v158, %v245
    %v247 = vsel %vm246, 1, 0
    %v248 = vcvt.s32.f32 %v247
    %250 = vrot.lane.b32.xlu0 %v248, 16
    %v251 = vpop.permute.xlu0 %250
    %v253 = vmul.f32 %v154, %v251
    %255 = vrot.lane.b32.xlu0 %v253, 112
    %v256 = vpop.permute.xlu0 %255
    %vm258 = vcmask 130048
    %v259 = vsel %vm258, %v256, 0.0
    %260 = vadd.xlane.f32.xlu0 %v259
    %v261 = vpop.xlane.xlu0 %260
    %vm262 = vcmp.gt.f32.partialorder %v261, 0.0
    %v263 = vsel %vm262, 1, 0
    %v264 = vmul.u32 %v241, 2
    %v265 = vadd.s32 %v264, %v263
    %266 = vset.pattern.permute.xlu0 1
    %267 = vperm.xlu0 %266, %v265
    %v268 = vpop.permute.xlu0 %267
    %v269 = vlaneseq
    %v270 = vshrl.u32 %v269, 7
    %v271 = vsub.s32 0, %v270
    %v272 = vrot.slane %v69, %v271
    %vm273 = vcmp.ge.s32.totalorder %v268, %v272
    %v274 = vlaneseq
    %v275 = vshrl.u32 %v274, 7
    %v276 = vsub.s32 0, %v275
    %v277 = vrot.slane %v70, %v276
    %vm278 = vcmp.lt.s32.totalorder %v268, %v277
    %vm279 = vmand %vm273, %vm278
    %v280 = vsel %vm279, %v154, 0.0
    %v282 = vsel %vm71, %v280, 0
    %284 = vmatprep.subr.mxu0 0.0
    %285 = vmatpush1.msra.mxu0 %v65
    %286 = vmatprep.subr.mxu0 0.0
    %287 = vmatpush1.msra.mxu0 %v66
    %288 = vmatprep.subr.mxu0 0.0
    %289 = vmatpush1.msra.mxu0 %v67
    %290 = vmatprep.subr.mxu0 0.0
    %291 = vmatpush1.msra.mxu0 %v68
    %292 = vmatprep.subr.mxu0 0.0
    %293 = vmatpush1.msra.mxu0 0.0
    %294 = vmatprep.subr.mxu0 0.0
    %295 = vmatpush1.msra.mxu0 0.0
    %296 = vmatprep.subr.mxu0 0.0
    %297 = vmatpush1.msra.mxu0 0.0
    %298 = vmatprep.subr.mxu0 0.0
    %299 = vmatpush1.msra.mxu0 0.0
    %300 = vmatprep.subr.mxu0 0.0
    %301 = vmatpush1.msra.mxu0 0.0
    %302 = vmatprep.subr.mxu0 0.0
    %303 = vmatpush1.msra.mxu0 0.0
    %304 = vmatprep.subr.mxu0 0.0
    %305 = vmatpush1.msra.mxu0 0.0
    %306 = vmatprep.subr.mxu0 0.0
    %307 = vmatpush1.msra.mxu0 0.0
    %308 = vmatprep.subr.mxu0 0.0
    %309 = vmatpush1.msra.mxu0 0.0
    %310 = vmatprep.subr.mxu0 0.0
    %311 = vmatpush1.msra.mxu0 0.0
    %312 = vmatprep.subr.mxu0 0.0
    %313 = vmatpush1.msra.mxu0 0.0
    %314 = vmatprep.subr.mxu0 0.0
    %315 = vmatpush1.msra.mxu0 0.0
    %316 = vmatprep.subr.mxu0 0.0
    %317 = vmatpush1.msra.mxu0 0.0
    %318 = vmatprep.subr.mxu0 0.0
    %319 = vmatpush1.msra.mxu0 0.0
    %320 = vmatprep.subr.mxu0 0.0
    %321 = vmatpush1.msra.mxu0 0.0
    %322 = vmatprep.subr.mxu0 0.0
    %323 = vmatpush1.msra.mxu0 0.0
    %324 = vmatprep.subr.mxu0 0.0
    %325 = vmatpush1.msra.mxu0 0.0
    %326 = vmatprep.subr.mxu0 0.0
    %327 = vmatpush1.msra.mxu0 0.0
    %328 = vmatprep.subr.mxu0 0.0
    %329 = vmatpush1.msra.mxu0 0.0
    %330 = vmatprep.subr.mxu0 0.0
    %331 = vmatpush1.msra.mxu0 0.0
    %332 = vmatprep.subr.mxu0 0.0
    %333 = vmatpush1.msra.mxu0 0.0
    %334 = vmatprep.subr.mxu0 0.0
    %335 = vmatpush1.msra.mxu0 0.0
    %336 = vmatprep.subr.mxu0 0.0
    %337 = vmatpush1.msra.mxu0 0.0
    %338 = vmatprep.subr.mxu0 0.0
    %339 = vmatpush1.msra.mxu0 0.0
    %340 = vmatprep.subr.mxu0 0.0
    %341 = vmatpush1.msra.mxu0 0.0
    %342 = vmatprep.subr.mxu0 0.0
    %343 = vmatpush1.msra.mxu0 0.0
    %344 = vmatprep.subr.mxu0 0.0
    %345 = vmatpush1.msra.mxu0 0.0
    %346 = vmatprep.subr.mxu0 0.0
    %347 = vmatpush1.msra.mxu0 0.0
    %348 = vmatprep.mubr.f32.mxu0 0.0
    %349 = vmatmul.mubr.f32.gmra.mrb[0].mxu0 %v282
    %v350 = vpop.f32.mrb[0].mxu0
    %v351 = vadd.f32 0.0, %v350
    %v352 = vpop.f32.mrb[0].mxu0
    %353 = vdwg.mxu0
    %354 = vst [vmem:[#allocation8] sm:$0xff] %v351
    // Predicated region
    $region34: #{tpu_custom_call.1} parent=1 // pred_check
      _
    $region35: #{tpu_custom_call.1} parent=1 // pred_check_branch
      %356 = sbr.rel (0) target = $region37
    $region36: #{tpu_custom_call.1} parent=1 // pred_region
      %s358 = ssub.s32 128, 128
      %359 = vsyncadd [#allocation4], %s358
      %s361 = sshll.u32 [#allocation8], 4
      %s362 = int_to_ptr.vmem [resolvable:$true] %s361
      %364 = dma.vmem_to_hbm [thread:$0]  %s362, 128, %s5, [#allocation4]
    $region37: #{tpu_custom_call.1} parent=1 // pred_fallthru
      _
    // Predicated region
    $region38: #{tpu_custom_call.1} parent=1 // pred_check
      _
    $region39: #{tpu_custom_call.1} parent=1 // pred_check_branch
      %366 = sbr.rel (0) target = $region41
    $region40: #{tpu_custom_call.1} parent=1 // pred_region
      %367 = dma.done [#allocation4], 128
    $region41: #{tpu_custom_call.1} parent=1 // pred_fallthru
      _
    %368 = vsyncpa [#allocation3], 1
    %369 = vsyncpa [#allocation6], 1
    %370 = vsyncpa [#allocation4], 1

</llo_original>
